<compile_context>
chip_gen: v7x
topology: tpu7x:2x2x1
jax: 0.10.0
libtpu: 0.0.40
codegen_flags: <defaults>
</compile_context>

<pallas_src>
import jax
import jax.numpy as jnp
from jax.experimental import pallas as pl
from jax.experimental.pallas import tpu as pltpu

# SMEM scalar packing offsets: [b1(3), w2(9; idx k*3+j), b2(3), w3(3), b3(1)]
_B1, _W2, _B2, _W3, _B3 = 0, 3, 12, 15, 18


def mlp_kernel(s_ref, w1t_ref, x_ref, o_ref):
    """s_ref: (19,) f32 SMEM scalars.  w1t_ref: (8, D) VMEM (rows 3..7 zero pad).
    x_ref: (TB, D) VMEM batch tile.   o_ref: (1, TB) lane-dense output tile."""
    # fc1 on the MXU: contract D on both operands so the batch ends up on lanes.
    h = jax.lax.dot_general(
        w1t_ref[...], x_ref[...],
        dimension_numbers=(((1,), (1,)), ((), ())),
        precision=jax.lax.Precision.HIGHEST,
        preferred_element_type=jnp.float32)                      # (8, TB)
    h1 = [jnp.maximum(h[j:j + 1, :] + s_ref[_B1 + j], 0.0) for j in range(3)]

    # fc2 (3x3): scalar-broadcast VPU FMAs on lane-dense (1, TB) rows.
    h2 = []
    for j in range(3):
        acc = s_ref[_B2 + j] + s_ref[_W2 + 0 * 3 + j] * h1[0]
        acc = acc + s_ref[_W2 + 1 * 3 + j] * h1[1]
        acc = acc + s_ref[_W2 + 2 * 3 + j] * h1[2]
        h2.append(jnp.maximum(acc, 0.0))

    # fc3 + sigmoid (exp/recip go to the EUP -- separate issue slot).
    z = s_ref[_B3] + s_ref[_W3 + 0] * h2[0]
    z = z + s_ref[_W3 + 1] * h2[1]
    z = z + s_ref[_W3 + 2] * h2[2]
    o_ref[...] = jax.nn.sigmoid(z)                               # lane-dense store


def mlp_3l_3n1n(x, params, *, tile_batch=2048):
    """x: (B, D) f32; params = (w1(D,3), b1(1,3), w2(3,3), b2(1,3), w3(3,1), b3(1,1))."""
    w1, b1, w2, b2, w3, b3 = params
    B, D = x.shape
    x = x.astype(jnp.float32)

    # w1^T padded to 8 sublanes so the MXU operand/result sit on a full native tile.
    w1t = jnp.zeros((8, D), jnp.float32).at[:3].set(jnp.transpose(w1).astype(jnp.float32))
    scal = jnp.concatenate([
        b1.reshape(-1), w2.reshape(-1), b2.reshape(-1),
        w3.reshape(-1), b3.reshape(-1),
    ]).astype(jnp.float32)                                       # (19,)

    # Batch tile: big tiles amortize per-step overhead; cap so the double-buffered
    # x tile stays comfortably inside scoped VMEM for any D.
    cap = max(128, ((4 * 1024 * 1024) // (4 * D)) // 128 * 128)
    tb = min(tile_batch, cap)
    if B <= tb:
        tb = B                                  # single full-extent block
    else:
        tb = max(128, (tb // 128) * 128)        # multi-block: lane/sublane aligned
    nblk = pl.cdiv(B, tb)
    b_pad = nblk * tb
    if b_pad != B:                              # ragged multi-block batches only
        x = jnp.pad(x, ((0, b_pad - B), (0, 0)))

    out = pl.pallas_call(
        mlp_kernel,
        out_shape=jax.ShapeDtypeStruct((1, b_pad), jnp.float32),
        grid=(nblk,),
        in_specs=[
            pl.BlockSpec(memory_space=pltpu.MemorySpace.SMEM),   # 19 scalars, once
            pl.BlockSpec((8, D), lambda i: (0, 0)),              # w1^T (grid-invariant)
            pl.BlockSpec((tb, D), lambda i: (i, 0)),             # x batch tile
        ],
        out_specs=pl.BlockSpec((1, tb), lambda i: (0, i)),       # lane-dense output
        compiler_params=pltpu.CompilerParams(
            dimension_semantics=("parallel",)),
    )(scal, w1t, x)

    return out.reshape(-1)[:B].reshape(B, 1)


def init_params(key, input_dim):
    """Deterministic init mimicking PyTorch nn.Linear default (U[-1/sqrt(fan_in), +])."""
    def linear(key, fan_in, fan_out):
        kw, kb = jax.random.split(key)
        bound = 1.0 / jnp.sqrt(fan_in)
        # stored as (in, out) = transpose of torch's (out, in) weight layout
        w = jax.random.uniform(kw, (fan_in, fan_out), jnp.float32, -bound, bound)
        b = jax.random.uniform(kb, (1, fan_out), jnp.float32, -bound, bound)
        return w, b

    k1, k2, k3 = jax.random.split(key, 3)
    w1, b1 = linear(k1, input_dim, 3)
    w2, b2 = linear(k2, 3, 3)
    w3, b3 = linear(k3, 3, 1)
    return (w1, b1, w2, b2, w3, b3)


def reference(x, params):
    w1, b1, w2, b2, w3, b3 = params
    h1 = jnp.maximum(jnp.dot(x, w1, precision="highest") + b1, 0.0)
    h2 = jnp.maximum(jnp.dot(h1, w2, precision="highest") + b2, 0.0)
    return jax.nn.sigmoid(jnp.dot(h2, w3, precision="highest") + b3)


if __name__ == "__main__":
    key = jax.random.PRNGKey(0)
    kx1, kx2, kx3, kp = jax.random.split(key, 4)

    D = 32
    params = init_params(kp, D)

    # Small batch: single full-extent block.
    x_small = jax.random.normal(kx1, (8, D), jnp.float32)
    out_small = jax.block_until_ready(mlp_3l_3n1n(x_small, params))
    assert out_small.shape == (8, 1)
    assert jnp.allclose(out_small, reference(x_small, params), atol=2e-4, rtol=2e-4), \
        "small-batch mismatch"

    # Multi-block grid (4 tiles of 128 rows), divisible batch.
    x_mid = jax.random.normal(kx2, (512, D), jnp.float32)
    out_mid = jax.block_until_ready(mlp_3l_3n1n(x_mid, params, tile_batch=128))
    assert out_mid.shape == (512, 1)
    assert jnp.allclose(out_mid, reference(x_mid, params), atol=2e-4, rtol=2e-4), \
        "mid-batch mismatch"

    # Ragged batch: multi-block + pad/discard path.
    x_big = jax.random.normal(kx3, (300, D), jnp.float32)
    out_big = jax.block_until_ready(mlp_3l_3n1n(x_big, params, tile_batch=128))
    assert out_big.shape == (300, 1)
    assert jnp.allclose(out_big, reference(x_big, params), atol=2e-4, rtol=2e-4), \
        "ragged-batch mismatch"

    print("KERNEL_OK")
</pallas_src>

<mosaic_0001>
module attributes {stable_mosaic.version = 11 : i64} {
  func.func @mlp_kernel(%arg0: i32, %arg1: memref<19xf32, #tpu.memory_space<smem>>, %arg2: memref<8x32xf32, #tpu.memory_space<vmem>>, %arg3: memref<8x32xf32, #tpu.memory_space<vmem>>, %arg4: memref<1x8xf32, #tpu.memory_space<vmem>>) attributes {dimension_semantics = [#tpu.dimension_semantics<parallel>], iteration_bounds = array<i64: 1>, scalar_prefetch = 0 : i64, scratch_operands = 0 : i64, tpu.core_type = #tpu.core_type<tc>, window_params = [{transform_indices = @transform_0, window_bounds = array<i64: 19>}, {pipeline_mode = #tpu.pipeline_mode<synchronous>, transform_indices = @transform_1, window_bounds = array<i64: 8, 32>}, {transform_indices = @transform_2, window_bounds = array<i64: 8, 32>}, {transform_indices = @transform_3, window_bounds = array<i64: 1, 8>}]} {
    %c0 = arith.constant 0 : index
    %c0_0 = arith.constant 0 : index
    %0 = vector.load %arg2[%c0, %c0_0] : memref<8x32xf32, #tpu.memory_space<vmem>>, vector<8x32xf32>
    %c0_1 = arith.constant 0 : index
    %c0_2 = arith.constant 0 : index
    %1 = vector.load %arg3[%c0_1, %c0_2] : memref<8x32xf32, #tpu.memory_space<vmem>>, vector<8x32xf32>
    %cst = arith.constant dense<0.000000e+00> : vector<8x8xf32>
    %2 = tpu.matmul %0, %1, %cst {dimension_numbers = #tpu.dot_dimension_numbers<[1], [1], [0], [0], [0, 0, 1, 0], [], []>, precision = #tpu.contract_precision<fp32>} : vector<8x32xf32>, vector<8x32xf32>, vector<8x8xf32> -> vector<8x8xf32>
    %3 = vector.extract_strided_slice %2 {offsets = [0, 0], sizes = [1, 8], strides = [1, 1]} : vector<8x8xf32> to vector<1x8xf32>
    %c0_3 = arith.constant 0 : index
    %4 = memref.load %arg1[%c0_3] : memref<19xf32, #tpu.memory_space<smem>>
    %5 = vector.broadcast %4 : f32 to vector<1x8xf32>
    %6 = arith.addf %3, %5 : vector<1x8xf32>
    %cst_4 = arith.constant 0.000000e+00 : f32
    %7 = vector.broadcast %cst_4 : f32 to vector<1x8xf32>
    %8 = arith.maximumf %6, %7 : vector<1x8xf32>
    %9 = vector.extract_strided_slice %2 {offsets = [1, 0], sizes = [1, 8], strides = [1, 1]} : vector<8x8xf32> to vector<1x8xf32>
    %c1 = arith.constant 1 : index
    %10 = memref.load %arg1[%c1] : memref<19xf32, #tpu.memory_space<smem>>
    %11 = vector.broadcast %10 : f32 to vector<1x8xf32>
    %12 = arith.addf %9, %11 : vector<1x8xf32>
    %cst_5 = arith.constant 0.000000e+00 : f32
    %13 = vector.broadcast %cst_5 : f32 to vector<1x8xf32>
    %14 = arith.maximumf %12, %13 : vector<1x8xf32>
    %15 = vector.extract_strided_slice %2 {offsets = [2, 0], sizes = [1, 8], strides = [1, 1]} : vector<8x8xf32> to vector<1x8xf32>
    %c2 = arith.constant 2 : index
    %16 = memref.load %arg1[%c2] : memref<19xf32, #tpu.memory_space<smem>>
    %17 = vector.broadcast %16 : f32 to vector<1x8xf32>
    %18 = arith.addf %15, %17 : vector<1x8xf32>
    %cst_6 = arith.constant 0.000000e+00 : f32
    %19 = vector.broadcast %cst_6 : f32 to vector<1x8xf32>
    %20 = arith.maximumf %18, %19 : vector<1x8xf32>
    %c12 = arith.constant 12 : index
    %21 = memref.load %arg1[%c12] : memref<19xf32, #tpu.memory_space<smem>>
    %c3 = arith.constant 3 : index
    %22 = memref.load %arg1[%c3] : memref<19xf32, #tpu.memory_space<smem>>
    %23 = vector.broadcast %22 : f32 to vector<1x8xf32>
    %24 = arith.mulf %23, %8 : vector<1x8xf32>
    %25 = vector.broadcast %21 : f32 to vector<1x8xf32>
    %26 = arith.addf %25, %24 : vector<1x8xf32>
    %c6 = arith.constant 6 : index
    %27 = memref.load %arg1[%c6] : memref<19xf32, #tpu.memory_space<smem>>
    %28 = vector.broadcast %27 : f32 to vector<1x8xf32>
    %29 = arith.mulf %28, %14 : vector<1x8xf32>
    %30 = arith.addf %26, %29 : vector<1x8xf32>
    %c9 = arith.constant 9 : index
    %31 = memref.load %arg1[%c9] : memref<19xf32, #tpu.memory_space<smem>>
    %32 = vector.broadcast %31 : f32 to vector<1x8xf32>
    %33 = arith.mulf %32, %20 : vector<1x8xf32>
    %34 = arith.addf %30, %33 : vector<1x8xf32>
    %cst_7 = arith.constant 0.000000e+00 : f32
    %35 = vector.broadcast %cst_7 : f32 to vector<1x8xf32>
    %36 = arith.maximumf %34, %35 : vector<1x8xf32>
    %c13 = arith.constant 13 : index
    %37 = memref.load %arg1[%c13] : memref<19xf32, #tpu.memory_space<smem>>
    %c4 = arith.constant 4 : index
    %38 = memref.load %arg1[%c4] : memref<19xf32, #tpu.memory_space<smem>>
    %39 = vector.broadcast %38 : f32 to vector<1x8xf32>
    %40 = arith.mulf %39, %8 : vector<1x8xf32>
    %41 = vector.broadcast %37 : f32 to vector<1x8xf32>
    %42 = arith.addf %41, %40 : vector<1x8xf32>
    %c7 = arith.constant 7 : index
    %43 = memref.load %arg1[%c7] : memref<19xf32, #tpu.memory_space<smem>>
    %44 = vector.broadcast %43 : f32 to vector<1x8xf32>
    %45 = arith.mulf %44, %14 : vector<1x8xf32>
    %46 = arith.addf %42, %45 : vector<1x8xf32>
    %c10 = arith.constant 10 : index
    %47 = memref.load %arg1[%c10] : memref<19xf32, #tpu.memory_space<smem>>
    %48 = vector.broadcast %47 : f32 to vector<1x8xf32>
    %49 = arith.mulf %48, %20 : vector<1x8xf32>
    %50 = arith.addf %46, %49 : vector<1x8xf32>
    %cst_8 = arith.constant 0.000000e+00 : f32
    %51 = vector.broadcast %cst_8 : f32 to vector<1x8xf32>
    %52 = arith.maximumf %50, %51 : vector<1x8xf32>
    %c14 = arith.constant 14 : index
    %53 = memref.load %arg1[%c14] : memref<19xf32, #tpu.memory_space<smem>>
    %c5 = arith.constant 5 : index
    %54 = memref.load %arg1[%c5] : memref<19xf32, #tpu.memory_space<smem>>
    %55 = vector.broadcast %54 : f32 to vector<1x8xf32>
    %56 = arith.mulf %55, %8 : vector<1x8xf32>
    %57 = vector.broadcast %53 : f32 to vector<1x8xf32>
    %58 = arith.addf %57, %56 : vector<1x8xf32>
    %c8 = arith.constant 8 : index
    %59 = memref.load %arg1[%c8] : memref<19xf32, #tpu.memory_space<smem>>
    %60 = vector.broadcast %59 : f32 to vector<1x8xf32>
    %61 = arith.mulf %60, %14 : vector<1x8xf32>
    %62 = arith.addf %58, %61 : vector<1x8xf32>
    %c11 = arith.constant 11 : index
    %63 = memref.load %arg1[%c11] : memref<19xf32, #tpu.memory_space<smem>>
    %64 = vector.broadcast %63 : f32 to vector<1x8xf32>
    %65 = arith.mulf %64, %20 : vector<1x8xf32>
    %66 = arith.addf %62, %65 : vector<1x8xf32>
    %cst_9 = arith.constant 0.000000e+00 : f32
    %67 = vector.broadcast %cst_9 : f32 to vector<1x8xf32>
    %68 = arith.maximumf %66, %67 : vector<1x8xf32>
    %c18 = arith.constant 18 : index
    %69 = memref.load %arg1[%c18] : memref<19xf32, #tpu.memory_space<smem>>
    %c15 = arith.constant 15 : index
    %70 = memref.load %arg1[%c15] : memref<19xf32, #tpu.memory_space<smem>>
    %71 = vector.broadcast %70 : f32 to vector<1x8xf32>
    %72 = arith.mulf %71, %36 : vector<1x8xf32>
    %73 = vector.broadcast %69 : f32 to vector<1x8xf32>
    %74 = arith.addf %73, %72 : vector<1x8xf32>
    %c16 = arith.constant 16 : index
    %75 = memref.load %arg1[%c16] : memref<19xf32, #tpu.memory_space<smem>>
    %76 = vector.broadcast %75 : f32 to vector<1x8xf32>
    %77 = arith.mulf %76, %52 : vector<1x8xf32>
    %78 = arith.addf %74, %77 : vector<1x8xf32>
    %c17 = arith.constant 17 : index
    %79 = memref.load %arg1[%c17] : memref<19xf32, #tpu.memory_space<smem>>
    %80 = vector.broadcast %79 : f32 to vector<1x8xf32>
    %81 = arith.mulf %80, %68 : vector<1x8xf32>
    %82 = arith.addf %78, %81 : vector<1x8xf32>
    %83 = arith.negf %82 : vector<1x8xf32>
    %84 = math.exp %83 : vector<1x8xf32>
    %cst_10 = arith.constant 1.000000e+00 : f32
    %85 = vector.broadcast %cst_10 : f32 to vector<1x8xf32>
    %86 = arith.addf %85, %84 : vector<1x8xf32>
    %87 = arith.divf %85, %86 : vector<1x8xf32>
    %c0_11 = arith.constant 0 : index
    %c0_12 = arith.constant 0 : index
    %88 = vector.load %arg4[%c0_11, %c0_12] : memref<1x8xf32, #tpu.memory_space<vmem>>, vector<1x8xf32>
    tpu.vector_store %arg4[%c0_11, %c0_12], %87 {strides = array<i32>} : memref<1x8xf32, #tpu.memory_space<vmem>>, vector<1x8xf32>,
    return
  }
  func.func @transform_0(%arg0: i32) -> i32 {
    %c0_i32 = arith.constant 0 : i32
    %c0_i32_0 = arith.constant 0 : i32
    return %c0_i32 : i32
  }
  func.func @transform_1(%arg0: i32) -> (i32, i32) {
    %c0_i32 = arith.constant 0 : i32
    %c0_i32_0 = arith.constant 0 : i32
    %c0_i32_1 = arith.constant 0 : i32
    return %c0_i32, %c0_i32_0 : i32, i32
  }
  func.func @transform_2(%arg0: i32) -> (i32, i32) {
    %c0_i32 = arith.constant 0 : i32
    %c0_i32_0 = arith.constant 0 : i32
    return %arg0, %c0_i32 : i32, i32
  }
  func.func @transform_3(%arg0: i32) -> (i32, i32) {
    %c0_i32 = arith.constant 0 : i32
    %c0_i32_0 = arith.constant 0 : i32
    return %c0_i32, %arg0 : i32, i32
  }
}

</mosaic_0001>

<llo_original>
// kernel: tpu_custom_call.1
$region0: #{tpu_custom_call.1}
  #allocation0 [shape = 'u32[]', space=smem, size = 0x4, offset = 0x4, fixed_abs, tag = 'smem constant byte address 0x4 - core index']
  #allocation1 [shape = 'u32[144,128]{1,0:T(1,128)}', space=vmem, size = 0x12000, scoped, tag = 'internal scratch']
  %s0 = inlined_call_operand.hbm [shape: f32[19], index: 0, kind: input, shape index: {}]
  %s1 = inlined_call_operand.hbm [shape: f32[8,32], index: 1, kind: input, shape index: {}]
  %s2 = inlined_call_operand.hbm [shape: f32[8,32], index: 2, kind: input, shape index: {}]
  %s3 = inlined_call_operand.hbm [shape: f32[1,8], index: 3, kind: output, shape index: {}]
  %s4 = sld [smem:[#allocation0]]
  $region34: #{tpu_custom_call.1} parent=0
    _
  %s6 = ssub.s32 1, %s4
  %s7 = scalar_select 0, %s6, %s4
  $region1: #{tpu_custom_call.1} parent=0
    #allocation2 [shape = 'u8[512]{0}', space=smem, size = 0x200, scoped, tag = 'input window, operand 0, single buffered']
    #allocation3 [shape = 's32[1]{0}', space=sflag, size = 0x4, scoped, tag = 'scoped memory for tpu_custom_call.1']
    #allocation4 [shape = 's32[1]{0}', space=sflag, size = 0x4, scoped, tag = 'scoped memory for tpu_custom_call.1']
    #allocation5 [shape = 's32[1]{0}', space=sflag, size = 0x4, scoped, tag = 'scoped memory for tpu_custom_call.1']
    #allocation6 [shape = 'u8[4096]{0}', space=vmem, size = 0x1000, scoped, tag = 'input window, operand 1, single buffered']
    #allocation7 [shape = 'u8[4096]{0}', space=vmem, size = 0x1000, scoped, tag = 'input window, operand 2, single buffered']
    #allocation8 [shape = 's32[1]{0}', space=sflag, size = 0x4, scoped, tag = 'scoped memory for tpu_custom_call.1']
    #allocation9 [shape = 'u8[512]{0}', space=vmem, size = 0x400, scoped, tag = 'output window, operand 0, single buffered']
    %8 = vsyncpa [#allocation5], 0
    %9 = vsyncpa [#allocation3], 0
    %10 = vsyncpa [#allocation8], 0
    %11 = vsyncpa [#allocation4], 0
    // Predicated region
    $region2: #{tpu_custom_call.1} parent=1 // pred_check
      _
    $region3: #{tpu_custom_call.1} parent=1 // pred_check_branch
      %13 = sbr.rel (0) target = $region5
    $region4: #{tpu_custom_call.1} parent=1 // pred_region
      %s15 = ssub.s32 16, 16
      %16 = vsyncadd [#allocation5], %s15
      %19 = dma.hbm_to_smem %s0, 16, [#allocation2], [#allocation5]
    $region5: #{tpu_custom_call.1} parent=1 // pred_fallthru
      _
    // Predicated region
    $region6: #{tpu_custom_call.1} parent=1 // pred_check
      _
    $region7: #{tpu_custom_call.1} parent=1 // pred_check_branch
      %21 = sbr.rel (0) target = $region9
    $region8: #{tpu_custom_call.1} parent=1 // pred_region
      %s23 = ssub.s32 128, 128
      %24 = vsyncadd [#allocation3], %s23
      %s26 = sshll.u32 [#allocation6], 4
      %s27 = int_to_ptr.vmem [resolvable:$true] %s26
      %29 = dma.hbm_to_vmem [thread:$0]  %s1, 128, %s27, [#allocation3]
    $region9: #{tpu_custom_call.1} parent=1 // pred_fallthru
      _
    // Predicated region
    $region10: #{tpu_custom_call.1} parent=1 // pred_check
      _
    $region11: #{tpu_custom_call.1} parent=1 // pred_check_branch
      %31 = sbr.rel (0) target = $region13
    $region12: #{tpu_custom_call.1} parent=1 // pred_region
      %s33 = ssub.s32 128, 128
      %34 = vsyncadd [#allocation8], %s33
      %s36 = sshll.u32 [#allocation7], 4
      %s37 = int_to_ptr.vmem [resolvable:$true] %s36
      %39 = dma.hbm_to_vmem [thread:$0]  %s2, 128, %s37, [#allocation8]
    $region13: #{tpu_custom_call.1} parent=1 // pred_fallthru
      _
    // Predicated region
    $region14: #{tpu_custom_call.1} parent=1 // pred_check
      _
    $region15: #{tpu_custom_call.1} parent=1 // pred_check_branch
      %41 = sbr.rel (0) target = $region17
    $region16: #{tpu_custom_call.1} parent=1 // pred_region
      %42 = dma.done [#allocation5], 16
    $region17: #{tpu_custom_call.1} parent=1 // pred_fallthru
      _
    // Predicated region
    $region18: #{tpu_custom_call.1} parent=1 // pred_check
      _
    $region19: #{tpu_custom_call.1} parent=1 // pred_check_branch
      %44 = sbr.rel (0) target = $region21
    $region20: #{tpu_custom_call.1} parent=1 // pred_region
      %45 = dma.done [#allocation3], 128
    $region21: #{tpu_custom_call.1} parent=1 // pred_fallthru
      _
    // Predicated region
    $region22: #{tpu_custom_call.1} parent=1 // pred_check
      _
    $region23: #{tpu_custom_call.1} parent=1 // pred_check_branch
      %47 = sbr.rel (0) target = $region25
    $region24: #{tpu_custom_call.1} parent=1 // pred_region
      %48 = dma.done [#allocation8], 128
    $region25: #{tpu_custom_call.1} parent=1 // pred_fallthru
      _
    %49 = sfence
    %v50 = vld [vmem:[#allocation6] sm:$0xff]
    %v51 = vld [vmem:[#allocation7] sm:$0xff]
    %vm52 = vcmask 261120
    %v54 = vsel %vm52, %v50, 0
    %v57 = vsel %vm52, %v51, 0
    %59 = vmatprep.subr.mxu0 0.0
    %v60 = vand.u32 %v57, 4294901760
    %61 = vmatpush1.xpose.msra.mxu0 %v60
    %62 = vmatprep.subr.mxu0 0.0
    %63 = vmatpush1.xpose.msra.mxu0 0.0
    %64 = vmatprep.subr.mxu0 0.0
    %65 = vmatpush1.xpose.msra.mxu0 0.0
    %66 = vmatprep.subr.mxu0 0.0
    %67 = vmatpush1.xpose.msra.mxu0 0.0
    %68 = vmatprep.subr.mxu0 0.0
    %69 = vmatpush1.xpose.msra.mxu0 0.0
    %70 = vmatprep.subr.mxu0 0.0
    %71 = vmatpush1.xpose.msra.mxu0 0.0
    %72 = vmatprep.subr.mxu0 0.0
    %73 = vmatpush1.xpose.msra.mxu0 0.0
    %74 = vmatprep.subr.mxu0 0.0
    %75 = vmatpush1.xpose.msra.mxu0 0.0
    %76 = vmatprep.subr.mxu0 0.0
    %77 = vmatpush1.xpose.msra.mxu0 0.0
    %78 = vmatprep.subr.mxu0 0.0
    %79 = vmatpush1.xpose.msra.mxu0 0.0
    %80 = vmatprep.subr.mxu0 0.0
    %81 = vmatpush1.xpose.msra.mxu0 0.0
    %82 = vmatprep.subr.mxu0 0.0
    %83 = vmatpush1.xpose.msra.mxu0 0.0
    %84 = vmatprep.subr.mxu0 0.0
    %85 = vmatpush1.xpose.msra.mxu0 0.0
    %86 = vmatprep.subr.mxu0 0.0
    %87 = vmatpush1.xpose.msra.mxu0 0.0
    %88 = vmatprep.subr.mxu0 0.0
    %89 = vmatpush1.xpose.msra.mxu0 0.0
    %90 = vmatprep.subr.mxu0 0.0
    %91 = vmatpush1.xpose.msra.mxu0 0.0
    %92 = vmatprep.subr.mxu0 0.0
    %93 = vmatpush1.xpose.msra.mxu0 0.0
    %94 = vmatprep.subr.mxu0 0.0
    %95 = vmatpush1.xpose.msra.mxu0 0.0
    %96 = vmatprep.subr.mxu0 0.0
    %97 = vmatpush1.xpose.msra.mxu0 0.0
    %98 = vmatprep.subr.mxu0 0.0
    %99 = vmatpush1.xpose.msra.mxu0 0.0
    %100 = vmatprep.subr.mxu0 0.0
    %101 = vmatpush1.xpose.msra.mxu0 0.0
    %102 = vmatprep.subr.mxu0 0.0
    %103 = vmatpush1.xpose.msra.mxu0 0.0
    %104 = vmatprep.subr.mxu0 0.0
    %105 = vmatpush1.xpose.msra.mxu0 0.0
    %106 = vmatprep.subr.mxu0 0.0
    %107 = vmatpush1.xpose.msra.mxu0 0.0
    %108 = vmatprep.subr.mxu0 0.0
    %109 = vmatpush1.xpose.msra.mxu0 0.0
    %110 = vmatprep.subr.mxu0 0.0
    %111 = vmatpush1.xpose.msra.mxu0 0.0
    %112 = vmatprep.subr.mxu0 0.0
    %113 = vmatpush1.xpose.msra.mxu0 0.0
    %114 = vmatprep.subr.mxu0 0.0
    %115 = vmatpush1.xpose.msra.mxu0 0.0
    %116 = vmatprep.subr.mxu0 0.0
    %117 = vmatpush1.xpose.msra.mxu0 0.0
    %118 = vmatprep.subr.mxu0 0.0
    %119 = vmatpush1.xpose.msra.mxu0 0.0
    %120 = vmatprep.subr.mxu0 0.0
    %121 = vmatpush1.xpose.msra.mxu0 0.0
    %122 = vmatprep.subr.mxu0 0.0
    %123 = vmatpush1.xpose.msra.mxu0 0.0
    %124 = vmatprep.mubr.f32.mxu0 0.0
    %v125 = vand.u32 %v54, 4294901760
    %v126 = vsub.f32 %v54, %v125
    %v127 = vand.u32 %v126, 4294901760
    %v128 = vsub.f32 %v126, %v127
    %v129 = vand.u32 %v128, 4294901760
    %130 = vmatmul.mubr.f32.gmra.mrb[0].mxu0 %v129
    %v131 = vpop.f32.mrb[0].mxu0
    %v132 = vadd.f32 0.0, %v131
    %v133 = vpop.f32.mrb[0].mxu0
    %134 = vdwg.mxu0
    %135 = vmatprep.subr.mxu0 0.0
    %v136 = vand.u32 %v57, 4294901760
    %v137 = vsub.f32 %v57, %v136
    %v138 = vand.u32 %v137, 4294901760
    %v139 = vsub.f32 %v137, %v138
    %v140 = vand.u32 %v139, 4294901760
    %141 = vmatpush1.xpose.msra.mxu0 %v140
    %142 = vmatprep.subr.mxu0 0.0
    %143 = vmatpush1.xpose.msra.mxu0 0.0
    %144 = vmatprep.subr.mxu0 0.0
    %145 = vmatpush1.xpose.msra.mxu0 0.0
    %146 = vmatprep.subr.mxu0 0.0
    %147 = vmatpush1.xpose.msra.mxu0 0.0
    %148 = vmatprep.subr.mxu0 0.0
    %149 = vmatpush1.xpose.msra.mxu0 0.0
    %150 = vmatprep.subr.mxu0 0.0
    %151 = vmatpush1.xpose.msra.mxu0 0.0
    %152 = vmatprep.subr.mxu0 0.0
    %153 = vmatpush1.xpose.msra.mxu0 0.0
    %154 = vmatprep.subr.mxu0 0.0
    %155 = vmatpush1.xpose.msra.mxu0 0.0
    %156 = vmatprep.subr.mxu0 0.0
    %157 = vmatpush1.xpose.msra.mxu0 0.0
    %158 = vmatprep.subr.mxu0 0.0
    %159 = vmatpush1.xpose.msra.mxu0 0.0
    %160 = vmatprep.subr.mxu0 0.0
    %161 = vmatpush1.xpose.msra.mxu0 0.0
    %162 = vmatprep.subr.mxu0 0.0
    %163 = vmatpush1.xpose.msra.mxu0 0.0
    %164 = vmatprep.subr.mxu0 0.0
    %165 = vmatpush1.xpose.msra.mxu0 0.0
    %166 = vmatprep.subr.mxu0 0.0
    %167 = vmatpush1.xpose.msra.mxu0 0.0
    %168 = vmatprep.subr.mxu0 0.0
    %169 = vmatpush1.xpose.msra.mxu0 0.0
    %170 = vmatprep.subr.mxu0 0.0
    %171 = vmatpush1.xpose.msra.mxu0 0.0
    %172 = vmatprep.subr.mxu0 0.0
    %173 = vmatpush1.xpose.msra.mxu0 0.0
    %174 = vmatprep.subr.mxu0 0.0
    %175 = vmatpush1.xpose.msra.mxu0 0.0
    %176 = vmatprep.subr.mxu0 0.0
    %177 = vmatpush1.xpose.msra.mxu0 0.0
    %178 = vmatprep.subr.mxu0 0.0
    %179 = vmatpush1.xpose.msra.mxu0 0.0
    %180 = vmatprep.subr.mxu0 0.0
    %181 = vmatpush1.xpose.msra.mxu0 0.0
    %182 = vmatprep.subr.mxu0 0.0
    %183 = vmatpush1.xpose.msra.mxu0 0.0
    %184 = vmatprep.subr.mxu0 0.0
    %185 = vmatpush1.xpose.msra.mxu0 0.0
    %186 = vmatprep.subr.mxu0 0.0
    %187 = vmatpush1.xpose.msra.mxu0 0.0
    %188 = vmatprep.subr.mxu0 0.0
    %189 = vmatpush1.xpose.msra.mxu0 0.0
    %190 = vmatprep.subr.mxu0 0.0
    %191 = vmatpush1.xpose.msra.mxu0 0.0
    %192 = vmatprep.subr.mxu0 0.0
    %193 = vmatpush1.xpose.msra.mxu0 0.0
    %194 = vmatprep.subr.mxu0 0.0
    %195 = vmatpush1.xpose.msra.mxu0 0.0
    %196 = vmatprep.subr.mxu0 0.0
    %197 = vmatpush1.xpose.msra.mxu0 0.0
    %198 = vmatprep.subr.mxu0 0.0
    %199 = vmatpush1.xpose.msra.mxu0 0.0
    %200 = vmatprep.subr.mxu0 0.0
    %201 = vmatpush1.xpose.msra.mxu0 0.0
    %202 = vmatprep.subr.mxu0 0.0
    %203 = vmatpush1.xpose.msra.mxu0 0.0
    %204 = vmatprep.mubr.f32.mxu0 0.0
    %v205 = vand.u32 %v54, 4294901760
    %206 = vmatmul.mubr.f32.gmra.mrb[0].mxu0 %v205
    %v207 = vpop.f32.mrb[0].mxu0
    %v208 = vadd.f32 %v132, %v207
    %v209 = vpop.f32.mrb[0].mxu0
    %210 = vdwg.mxu0
    %211 = vmatprep.subr.mxu0 0.0
    %v212 = vand.u32 %v57, 4294901760
    %v213 = vsub.f32 %v57, %v212
    %214 = vmatpush1.xpose.msra.mxu0 %v213
    %215 = vmatprep.subr.mxu0 0.0
    %216 = vmatpush1.xpose.msra.mxu0 0.0
    %217 = vmatprep.subr.mxu0 0.0
    %218 = vmatpush1.xpose.msra.mxu0 0.0
    %219 = vmatprep.subr.mxu0 0.0
    %220 = vmatpush1.xpose.msra.mxu0 0.0
    %221 = vmatprep.subr.mxu0 0.0
    %222 = vmatpush1.xpose.msra.mxu0 0.0
    %223 = vmatprep.subr.mxu0 0.0
    %224 = vmatpush1.xpose.msra.mxu0 0.0
    %225 = vmatprep.subr.mxu0 0.0
    %226 = vmatpush1.xpose.msra.mxu0 0.0
    %227 = vmatprep.subr.mxu0 0.0
    %228 = vmatpush1.xpose.msra.mxu0 0.0
    %229 = vmatprep.subr.mxu0 0.0
    %230 = vmatpush1.xpose.msra.mxu0 0.0
    %231 = vmatprep.subr.mxu0 0.0
    %232 = vmatpush1.xpose.msra.mxu0 0.0
    %233 = vmatprep.subr.mxu0 0.0
    %234 = vmatpush1.xpose.msra.mxu0 0.0
    %235 = vmatprep.subr.mxu0 0.0
    %236 = vmatpush1.xpose.msra.mxu0 0.0
    %237 = vmatprep.subr.mxu0 0.0
    %238 = vmatpush1.xpose.msra.mxu0 0.0
    %239 = vmatprep.subr.mxu0 0.0
    %240 = vmatpush1.xpose.msra.mxu0 0.0
    %241 = vmatprep.subr.mxu0 0.0
    %242 = vmatpush1.xpose.msra.mxu0 0.0
    %243 = vmatprep.subr.mxu0 0.0
    %244 = vmatpush1.xpose.msra.mxu0 0.0
    %245 = vmatprep.subr.mxu0 0.0
    %246 = vmatpush1.xpose.msra.mxu0 0.0
    %247 = vmatprep.subr.mxu0 0.0
    %248 = vmatpush1.xpose.msra.mxu0 0.0
    %249 = vmatprep.subr.mxu0 0.0
    %250 = vmatpush1.xpose.msra.mxu0 0.0
    %251 = vmatprep.subr.mxu0 0.0
    %252 = vmatpush1.xpose.msra.mxu0 0.0
    %253 = vmatprep.subr.mxu0 0.0
    %254 = vmatpush1.xpose.msra.mxu0 0.0
    %255 = vmatprep.subr.mxu0 0.0
    %256 = vmatpush1.xpose.msra.mxu0 0.0
    %257 = vmatprep.subr.mxu0 0.0
    %258 = vmatpush1.xpose.msra.mxu0 0.0
    %259 = vmatprep.subr.mxu0 0.0
    %260 = vmatpush1.xpose.msra.mxu0 0.0
    %261 = vmatprep.subr.mxu0 0.0
    %262 = vmatpush1.xpose.msra.mxu0 0.0
    %263 = vmatprep.subr.mxu0 0.0
    %264 = vmatpush1.xpose.msra.mxu0 0.0
    %265 = vmatprep.subr.mxu0 0.0
    %266 = vmatpush1.xpose.msra.mxu0 0.0
    %267 = vmatprep.subr.mxu0 0.0
    %268 = vmatpush1.xpose.msra.mxu0 0.0
    %269 = vmatprep.subr.mxu0 0.0
    %270 = vmatpush1.xpose.msra.mxu0 0.0
    %271 = vmatprep.subr.mxu0 0.0
    %272 = vmatpush1.xpose.msra.mxu0 0.0
    %273 = vmatprep.subr.mxu0 0.0
    %274 = vmatpush1.xpose.msra.mxu0 0.0
    %275 = vmatprep.subr.mxu0 0.0
    %276 = vmatpush1.xpose.msra.mxu0 0.0
    %277 = vmatprep.mubr.f32.mxu0 0.0
    %v278 = vand.u32 %v54, 4294901760
    %v279 = vsub.f32 %v54, %v278
    %280 = vmatmul.mubr.f32.gmra.mrb[0].mxu0 %v279
    %v281 = vpop.f32.mrb[0].mxu0
    %v282 = vadd.f32 %v208, %v281
    %v283 = vpop.f32.mrb[0].mxu0
    %284 = vdwg.mxu0
    %285 = vmatprep.subr.mxu0 0.0
    %v286 = vand.u32 %v57, 4294901760
    %287 = vmatpush1.xpose.msra.mxu0 %v286
    %288 = vmatprep.subr.mxu0 0.0
    %289 = vmatpush1.xpose.msra.mxu0 0.0
    %290 = vmatprep.subr.mxu0 0.0
    %291 = vmatpush1.xpose.msra.mxu0 0.0
    %292 = vmatprep.subr.mxu0 0.0
    %293 = vmatpush1.xpose.msra.mxu0 0.0
    %294 = vmatprep.subr.mxu0 0.0
    %295 = vmatpush1.xpose.msra.mxu0 0.0
    %296 = vmatprep.subr.mxu0 0.0
    %297 = vmatpush1.xpose.msra.mxu0 0.0
    %298 = vmatprep.subr.mxu0 0.0
    %299 = vmatpush1.xpose.msra.mxu0 0.0
    %300 = vmatprep.subr.mxu0 0.0
    %301 = vmatpush1.xpose.msra.mxu0 0.0
    %302 = vmatprep.subr.mxu0 0.0
    %303 = vmatpush1.xpose.msra.mxu0 0.0
    %304 = vmatprep.subr.mxu0 0.0
    %305 = vmatpush1.xpose.msra.mxu0 0.0
    %306 = vmatprep.subr.mxu0 0.0
    %307 = vmatpush1.xpose.msra.mxu0 0.0
    %308 = vmatprep.subr.mxu0 0.0
    %309 = vmatpush1.xpose.msra.mxu0 0.0
    %310 = vmatprep.subr.mxu0 0.0
    %311 = vmatpush1.xpose.msra.mxu0 0.0
    %312 = vmatprep.subr.mxu0 0.0
    %313 = vmatpush1.xpose.msra.mxu0 0.0
    %314 = vmatprep.subr.mxu0 0.0
    %315 = vmatpush1.xpose.msra.mxu0 0.0
    %316 = vmatprep.subr.mxu0 0.0
    %317 = vmatpush1.xpose.msra.mxu0 0.0
    %318 = vmatprep.subr.mxu0 0.0
    %319 = vmatpush1.xpose.msra.mxu0 0.0
    %320 = vmatprep.subr.mxu0 0.0
    %321 = vmatpush1.xpose.msra.mxu0 0.0
    %322 = vmatprep.subr.mxu0 0.0
    %323 = vmatpush1.xpose.msra.mxu0 0.0
    %324 = vmatprep.subr.mxu0 0.0
    %325 = vmatpush1.xpose.msra.mxu0 0.0
    %326 = vmatprep.subr.mxu0 0.0
    %327 = vmatpush1.xpose.msra.mxu0 0.0
    %328 = vmatprep.subr.mxu0 0.0
    %329 = vmatpush1.xpose.msra.mxu0 0.0
    %330 = vmatprep.subr.mxu0 0.0
    %331 = vmatpush1.xpose.msra.mxu0 0.0
    %332 = vmatprep.subr.mxu0 0.0
    %333 = vmatpush1.xpose.msra.mxu0 0.0
    %334 = vmatprep.subr.mxu0 0.0
    %335 = vmatpush1.xpose.msra.mxu0 0.0
    %336 = vmatprep.subr.mxu0 0.0
    %337 = vmatpush1.xpose.msra.mxu0 0.0
    %338 = vmatprep.subr.mxu0 0.0
    %339 = vmatpush1.xpose.msra.mxu0 0.0
    %340 = vmatprep.subr.mxu0 0.0
    %341 = vmatpush1.xpose.msra.mxu0 0.0
    %342 = vmatprep.subr.mxu0 0.0
    %343 = vmatpush1.xpose.msra.mxu0 0.0
    %344 = vmatprep.subr.mxu0 0.0
    %345 = vmatpush1.xpose.msra.mxu0 0.0
    %346 = vmatprep.subr.mxu0 0.0
    %347 = vmatpush1.xpose.msra.mxu0 0.0
    %348 = vmatprep.subr.mxu0 0.0
    %349 = vmatpush1.xpose.msra.mxu0 0.0
    %350 = vmatprep.mubr.f32.mxu0 0.0
    %v351 = vand.u32 %v54, 4294901760
    %v352 = vsub.f32 %v54, %v351
    %v353 = vand.u32 %v352, 4294901760
    %354 = vmatmul.mubr.f32.gmra.mrb[0].mxu0 %v353
    %v355 = vpop.f32.mrb[0].mxu0
    %v356 = vadd.f32 %v282, %v355
    %v357 = vpop.f32.mrb[0].mxu0
    %358 = vdwg.mxu0
    %359 = vmatprep.subr.mxu0 0.0
    %v360 = vand.u32 %v57, 4294901760
    %v361 = vsub.f32 %v57, %v360
    %v362 = vand.u32 %v361, 4294901760
    %363 = vmatpush1.xpose.msra.mxu0 %v362
    %364 = vmatprep.subr.mxu0 0.0
    %365 = vmatpush1.xpose.msra.mxu0 0.0
    %366 = vmatprep.subr.mxu0 0.0
    %367 = vmatpush1.xpose.msra.mxu0 0.0
    %368 = vmatprep.subr.mxu0 0.0
    %369 = vmatpush1.xpose.msra.mxu0 0.0
    %370 = vmatprep.subr.mxu0 0.0
    %371 = vmatpush1.xpose.msra.mxu0 0.0
    %372 = vmatprep.subr.mxu0 0.0
    %373 = vmatpush1.xpose.msra.mxu0 0.0
    %374 = vmatprep.subr.mxu0 0.0
    %375 = vmatpush1.xpose.msra.mxu0 0.0
    %376 = vmatprep.subr.mxu0 0.0
    %377 = vmatpush1.xpose.msra.mxu0 0.0
    %378 = vmatprep.subr.mxu0 0.0
    %379 = vmatpush1.xpose.msra.mxu0 0.0
    %380 = vmatprep.subr.mxu0 0.0
    %381 = vmatpush1.xpose.msra.mxu0 0.0
    %382 = vmatprep.subr.mxu0 0.0
    %383 = vmatpush1.xpose.msra.mxu0 0.0
    %384 = vmatprep.subr.mxu0 0.0
    %385 = vmatpush1.xpose.msra.mxu0 0.0
    %386 = vmatprep.subr.mxu0 0.0
    %387 = vmatpush1.xpose.msra.mxu0 0.0
    %388 = vmatprep.subr.mxu0 0.0
    %389 = vmatpush1.xpose.msra.mxu0 0.0
    %390 = vmatprep.subr.mxu0 0.0
    %391 = vmatpush1.xpose.msra.mxu0 0.0
    %392 = vmatprep.subr.mxu0 0.0
    %393 = vmatpush1.xpose.msra.mxu0 0.0
    %394 = vmatprep.subr.mxu0 0.0
    %395 = vmatpush1.xpose.msra.mxu0 0.0
    %396 = vmatprep.subr.mxu0 0.0
    %397 = vmatpush1.xpose.msra.mxu0 0.0
    %398 = vmatprep.subr.mxu0 0.0
    %399 = vmatpush1.xpose.msra.mxu0 0.0
    %400 = vmatprep.subr.mxu0 0.0
    %401 = vmatpush1.xpose.msra.mxu0 0.0
    %402 = vmatprep.subr.mxu0 0.0
    %403 = vmatpush1.xpose.msra.mxu0 0.0
    %404 = vmatprep.subr.mxu0 0.0
    %405 = vmatpush1.xpose.msra.mxu0 0.0
    %406 = vmatprep.subr.mxu0 0.0
    %407 = vmatpush1.xpose.msra.mxu0 0.0
    %408 = vmatprep.subr.mxu0 0.0
    %409 = vmatpush1.xpose.msra.mxu0 0.0
    %410 = vmatprep.subr.mxu0 0.0
    %411 = vmatpush1.xpose.msra.mxu0 0.0
    %412 = vmatprep.subr.mxu0 0.0
    %413 = vmatpush1.xpose.msra.mxu0 0.0
    %414 = vmatprep.subr.mxu0 0.0
    %415 = vmatpush1.xpose.msra.mxu0 0.0
    %416 = vmatprep.subr.mxu0 0.0
    %417 = vmatpush1.xpose.msra.mxu0 0.0
    %418 = vmatprep.subr.mxu0 0.0
    %419 = vmatpush1.xpose.msra.mxu0 0.0
    %420 = vmatprep.subr.mxu0 0.0
    %421 = vmatpush1.xpose.msra.mxu0 0.0
    %422 = vmatprep.subr.mxu0 0.0
    %423 = vmatpush1.xpose.msra.mxu0 0.0
    %424 = vmatprep.subr.mxu0 0.0
    %425 = vmatpush1.xpose.msra.mxu0 0.0
    %426 = vmatprep.mubr.f32.mxu0 0.0
    %v427 = vand.u32 %v54, 4294901760
    %428 = vmatmul.mubr.f32.gmra.mrb[0].mxu0 %v427
    %v429 = vpop.f32.mrb[0].mxu0
    %v430 = vadd.f32 %v356, %v429
    %v431 = vpop.f32.mrb[0].mxu0
    %432 = vdwg.mxu0
    %433 = vmatprep.subr.mxu0 0.0
    %v434 = vand.u32 %v57, 4294901760
    %435 = vmatpush1.xpose.msra.mxu0 %v434
    %436 = vmatprep.subr.mxu0 0.0
    %437 = vmatpush1.xpose.msra.mxu0 0.0
    %438 = vmatprep.subr.mxu0 0.0
    %439 = vmatpush1.xpose.msra.mxu0 0.0
    %440 = vmatprep.subr.mxu0 0.0
    %441 = vmatpush1.xpose.msra.mxu0 0.0
    %442 = vmatprep.subr.mxu0 0.0
    %443 = vmatpush1.xpose.msra.mxu0 0.0
    %444 = vmatprep.subr.mxu0 0.0
    %445 = vmatpush1.xpose.msra.mxu0 0.0
    %446 = vmatprep.subr.mxu0 0.0
    %447 = vmatpush1.xpose.msra.mxu0 0.0
    %448 = vmatprep.subr.mxu0 0.0
    %449 = vmatpush1.xpose.msra.mxu0 0.0
    %450 = vmatprep.subr.mxu0 0.0
    %451 = vmatpush1.xpose.msra.mxu0 0.0
    %452 = vmatprep.subr.mxu0 0.0
    %453 = vmatpush1.xpose.msra.mxu0 0.0
    %454 = vmatprep.subr.mxu0 0.0
    %455 = vmatpush1.xpose.msra.mxu0 0.0
    %456 = vmatprep.subr.mxu0 0.0
    %457 = vmatpush1.xpose.msra.mxu0 0.0
    %458 = vmatprep.subr.mxu0 0.0
    %459 = vmatpush1.xpose.msra.mxu0 0.0
    %460 = vmatprep.subr.mxu0 0.0
    %461 = vmatpush1.xpose.msra.mxu0 0.0
    %462 = vmatprep.subr.mxu0 0.0
    %463 = vmatpush1.xpose.msra.mxu0 0.0
    %464 = vmatprep.subr.mxu0 0.0
    %465 = vmatpush1.xpose.msra.mxu0 0.0
    %466 = vmatprep.subr.mxu0 0.0
    %467 = vmatpush1.xpose.msra.mxu0 0.0
    %468 = vmatprep.subr.mxu0 0.0
    %469 = vmatpush1.xpose.msra.mxu0 0.0
    %470 = vmatprep.subr.mxu0 0.0
    %471 = vmatpush1.xpose.msra.mxu0 0.0
    %472 = vmatprep.subr.mxu0 0.0
    %473 = vmatpush1.xpose.msra.mxu0 0.0
    %474 = vmatprep.subr.mxu0 0.0
    %475 = vmatpush1.xpose.msra.mxu0 0.0
    %476 = vmatprep.subr.mxu0 0.0
    %477 = vmatpush1.xpose.msra.mxu0 0.0
    %478 = vmatprep.subr.mxu0 0.0
    %479 = vmatpush1.xpose.msra.mxu0 0.0
    %480 = vmatprep.subr.mxu0 0.0
    %481 = vmatpush1.xpose.msra.mxu0 0.0
    %482 = vmatprep.subr.mxu0 0.0
    %483 = vmatpush1.xpose.msra.mxu0 0.0
    %484 = vmatprep.subr.mxu0 0.0
    %485 = vmatpush1.xpose.msra.mxu0 0.0
    %486 = vmatprep.subr.mxu0 0.0
    %487 = vmatpush1.xpose.msra.mxu0 0.0
    %488 = vmatprep.subr.mxu0 0.0
    %489 = vmatpush1.xpose.msra.mxu0 0.0
    %490 = vmatprep.subr.mxu0 0.0
    %491 = vmatpush1.xpose.msra.mxu0 0.0
    %492 = vmatprep.subr.mxu0 0.0
    %493 = vmatpush1.xpose.msra.mxu0 0.0
    %494 = vmatprep.subr.mxu0 0.0
    %495 = vmatpush1.xpose.msra.mxu0 0.0
    %496 = vmatprep.subr.mxu0 0.0
    %497 = vmatpush1.xpose.msra.mxu0 0.0
    %498 = vmatprep.mubr.f32.mxu0 0.0
    %v499 = vand.u32 %v54, 4294901760
    %500 = vmatmul.mubr.f32.gmra.mrb[0].mxu0 %v499
    %v501 = vpop.f32.mrb[0].mxu0
    %v502 = vadd.f32 %v430, %v501
    %v503 = vpop.f32.mrb[0].mxu0
    %504 = vdwg.mxu0
    %s505 = sld [smem:[#allocation2]]
    %v506 = vstv %s505
    %v507 = vadd.f32 %v502, %v506
    %v508 = vmax.f32 %v507, 0.0
    %s509 = sld [smem:[#allocation2 + $0x1]]
    %v510 = vstv %s509
    %v511 = vadd.f32 %v502, %v510
    %v512 = vmax.f32 %v511, 0.0
    %s513 = sld [smem:[#allocation2 + $0x2]]
    %v514 = vstv %s513
    %v515 = vadd.f32 %v502, %v514
    %v516 = vmax.f32 %v515, 0.0
    %s517 = sld [smem:[#allocation2 + $0xc]]
    %s518 = sld [smem:[#allocation2 + $0x3]]
    %v519 = vstv %s518
    %v520 = vmul.f32 %v519, %v508
    %v521 = vstv %s517
    %v522 = vadd.f32 %v521, %v520
    %s523 = sld [smem:[#allocation2 + $0x6]]
    %v524 = vstv %s523
    %v525 = vmul.f32 %v524, %v512
    %v527 = vrot.slane %v525, 1
    %v529 = vadd.f32 %v522, %v527
    %s530 = sld [smem:[#allocation2 + $0x9]]
    %v531 = vstv %s530
    %v532 = vmul.f32 %v531, %v516
    %v534 = vrot.slane %v532, 2
    %v536 = vadd.f32 %v529, %v534
    %v537 = vmax.f32 %v536, 0.0
    %s538 = sld [smem:[#allocation2 + $0xd]]
    %s539 = sld [smem:[#allocation2 + $0x4]]
    %v540 = vstv %s539
    %v541 = vmul.f32 %v540, %v508
    %v542 = vstv %s538
    %v543 = vadd.f32 %v542, %v541
    %s544 = sld [smem:[#allocation2 + $0x7]]
    %v545 = vstv %s544
    %v546 = vmul.f32 %v545, %v512
    %v548 = vrot.slane %v546, 1
    %v550 = vadd.f32 %v543, %v548
    %s551 = sld [smem:[#allocation2 + $0xa]]
    %v552 = vstv %s551
    %v553 = vmul.f32 %v552, %v516
    %v555 = vrot.slane %v553, 2
    %v557 = vadd.f32 %v550, %v555
    %v558 = vmax.f32 %v557, 0.0
    %s559 = sld [smem:[#allocation2 + $0xe]]
    %s560 = sld [smem:[#allocation2 + $0x5]]
    %v561 = vstv %s560
    %v562 = vmul.f32 %v561, %v508
    %v563 = vstv %s559
    %v564 = vadd.f32 %v563, %v562
    %s565 = sld [smem:[#allocation2 + $0x8]]
    %v566 = vstv %s565
    %v567 = vmul.f32 %v566, %v512
    %v569 = vrot.slane %v567, 1
    %v571 = vadd.f32 %v564, %v569
    %s572 = sld [smem:[#allocation2 + $0xb]]
    %v573 = vstv %s572
    %v574 = vmul.f32 %v573, %v516
    %v576 = vrot.slane %v574, 2
    %v578 = vadd.f32 %v571, %v576
    %v579 = vmax.f32 %v578, 0.0
    %s580 = sld [smem:[#allocation2 + $0x12]]
    %s581 = sld [smem:[#allocation2 + $0xf]]
    %v582 = vstv %s581
    %v583 = vmul.f32 %v582, %v537
    %v584 = vstv %s580
    %v585 = vadd.f32 %v584, %v583
    %s586 = sld [smem:[#allocation2 + $0x10]]
    %v587 = vstv %s586
    %v588 = vmul.f32 %v587, %v558
    %v589 = vadd.f32 %v585, %v588
    %s590 = sld [smem:[#allocation2 + $0x11]]
    %v591 = vstv %s590
    %v592 = vmul.f32 %v591, %v579
    %v593 = vadd.f32 %v589, %v592
    %v594 = vxor.u32 %v593, 2147483648
    %v595 = vmul.f32 %v594, 1.442695
    %v596 = vpow.pop %v595
    %v597 = vadd.f32 %v596, 1.0
    %v598 = vrcp.pop %v597
    %v599 = vmul.f32 1.0, %v598
    %vm600 = vcmask 57344
    %601 = vst.msk [vmem:[#allocation9] sm:$0x1] %vm600, %v599
    // Predicated region
    $region26: #{tpu_custom_call.1} parent=1 // pred_check
      _
    $region27: #{tpu_custom_call.1} parent=1 // pred_check_branch
      %603 = sbr.rel (0) target = $region29
    $region28: #{tpu_custom_call.1} parent=1 // pred_region
      %s605 = ssub.s32 16, 16
      %606 = vsyncadd [#allocation4], %s605
      %s608 = sshll.u32 [#allocation9], 4
      %s609 = int_to_ptr.vmem [resolvable:$true] %s608
      %611 = dma.vmem_to_hbm [thread:$0]  %s609, 16, %s3, [#allocation4]
    $region29: #{tpu_custom_call.1} parent=1 // pred_fallthru
      _
    // Predicated region
    $region30: #{tpu_custom_call.1} parent=1 // pred_check
      _
    $region31: #{tpu_custom_call.1} parent=1 // pred_check_branch
      %613 = sbr.rel (0) target = $region33
    $region32: #{tpu_custom_call.1} parent=1 // pred_region
      %614 = dma.done [#allocation4], 16
    $region33: #{tpu_custom_call.1} parent=1 // pred_fallthru
      _
    %615 = vsyncpa [#allocation3], 1
    %616 = vsyncpa [#allocation8], 1
    %617 = vsyncpa [#allocation4], 1
    %618 = vsyncpa [#allocation5], 1

</llo_original>
